<compile_context>
chip_gen: v7x
topology: tpu7x:2x2x1
jax: 0.10.0
libtpu: 0.0.40
codegen_flags: <defaults>
</compile_context>

<pallas_src>
import functools

import jax
import jax.numpy as jnp
from jax.experimental import pallas as pl
from jax.experimental.pallas import tpu as pltpu

MAX_TM = 512        # max row tile for GEMM / fused kernels
NUM_CLASSES = 16    # small synthetic class count (yolo11n uses 80)
OUT_W = 8           # fused-kernel output width: boxes(4) | conf(1) | pad(3)


# ----------------------------------------------------------------------------
# Pallas kernels
# ----------------------------------------------------------------------------
def _gemm_bias_silu_kernel(x_ref, w_ref, b_ref, o_ref):
    """One M-tile of  X @ W + b  with fused SiLU.  bf16 MXU operands, f32 acc."""
    acc = jnp.dot(x_ref[...], w_ref[...], preferred_element_type=jnp.float32)
    acc = acc + b_ref[...]
    acc = acc * jax.nn.sigmoid(acc)          # SiLU in f32 (EUP path)
    o_ref[...] = acc.astype(o_ref.dtype)


def _fused_conv_head_decode_kernel(p_ref, w2_ref, b2_ref, wh_ref, bh_ref, o_ref,
                                   *, tm, ho, wo, stride):
    """conv2 GEMM + SiLU + 1x1 head GEMM + anchor-free decode, all in-register.

    p_ref : (tm, K2)  bf16 im2col patches of the conv1 feature map
    w2_ref: (K2, C2)  bf16 conv2 weight      b2_ref: (1, C2) f32 bias
    wh_ref: (C2, CH)  bf16 head weight       bh_ref: (1, CH) f32 bias
    o_ref : (tm, 8)   f32  [x1 y1 x2 y2 conf 0 0 0]
    """
    # conv2 tile (f32 accumulate, SiLU epilogue) -- never leaves VMEM/vregs
    f2 = jnp.dot(p_ref[...], w2_ref[...], preferred_element_type=jnp.float32)
    f2 = f2 + b2_ref[...]
    f2 = f2 * jax.nn.sigmoid(f2)

    # 1x1 detection head, fused
    head = jnp.dot(f2.astype(jnp.bfloat16), wh_ref[...],
                   preferred_element_type=jnp.float32) + bh_ref[...]

    # in-kernel anchor centers from the global row index (no HBM anchor stream).
    # rows are ordered (image, gy, gx); float math avoids vector int div/rem.
    row = jax.lax.broadcasted_iota(jnp.int32, (tm, 1), 0) + pl.program_id(0) * tm
    rowf = row.astype(jnp.float32)
    hw = float(ho * wo)
    in_img = rowf - jnp.floor(rowf / hw) * hw          # anchor index inside image
    gy = jnp.floor(in_img / float(wo))
    gx = in_img - gy * float(wo)

    # anchor-free decode (YOLOv5-style; column-wise, all (tm, 1) vectors)
    dx = jax.nn.sigmoid(head[:, 0:1]) * 2.0 - 0.5
    dy = jax.nn.sigmoid(head[:, 1:2]) * 2.0 - 0.5
    pw = (jax.nn.sigmoid(head[:, 2:3]) * 2.0) ** 2 * stride
    ph = (jax.nn.sigmoid(head[:, 3:4]) * 2.0) ** 2 * stride
    cx = (gx + 0.5 + dx) * stride
    cy = (gy + 0.5 + dy) * stride
    conf = jnp.max(jax.nn.sigmoid(head[:, 4:]), axis=-1, keepdims=True)

    o_ref[:, 0:1] = cx - 0.5 * pw
    o_ref[:, 1:2] = cy - 0.5 * ph
    o_ref[:, 2:3] = cx + 0.5 * pw
    o_ref[:, 3:4] = cy + 0.5 * ph
    o_ref[:, 4:5] = conf
    o_ref[:, 5:8] = jnp.zeros((tm, 3), jnp.float32)


# ----------------------------------------------------------------------------
# pallas_call wrappers
# ----------------------------------------------------------------------------
def _round_up(x, m):
    return ((x + m - 1) // m) * m


def _choose_tile(m, max_tm=MAX_TM):
    """Row tile: as big as possible (<=512, multiple of 8) but prefer grid >= 2
    so v7x's two TensorCores both get work on the 'parallel' axis."""
    mp = _round_up(m, 8)
    tm = min(max_tm, mp)
    if mp // tm < 2 and mp >= 16:
        tm = _round_up((mp + 1) // 2, 8)
    mp = _round_up(m, tm)
    return tm, mp


def _pad_rows(x, mp):
    m = x.shape[0]
    if mp != m:
        x = jnp.pad(x, ((0, mp - m), (0, 0)))
    return x


def gemm_bias_silu(patches, w, b):
    """patches: [M, K] bf16, w: [K, C] bf16, b: [C] f32 -> [M, C] bf16 (SiLU)."""
    m, k = patches.shape
    cout = w.shape[1]
    tm, mp = _choose_tile(m)
    xp = _pad_rows(patches, mp)
    out = pl.pallas_call(
        _gemm_bias_silu_kernel,
        out_shape=jax.ShapeDtypeStruct((mp, cout), jnp.bfloat16),
        grid_spec=pltpu.PrefetchScalarGridSpec(
            num_scalar_prefetch=0,
            grid=(mp // tm,),
            in_specs=[
                pl.BlockSpec((tm, k), lambda i: (i, 0)),
                pl.BlockSpec((k, cout), lambda i: (0, 0)),
                pl.BlockSpec((1, cout), lambda i: (0, 0)),
            ],
            out_specs=pl.BlockSpec((tm, cout), lambda i: (i, 0)),
        ),
        compiler_params=pltpu.CompilerParams(dimension_semantics=("parallel",)),
    )(xp, w, b.reshape(1, cout).astype(jnp.float32))
    return out[:m]


def fused_conv_head_decode(patches, w2, b2, wh, bh, *, ho, wo, stride):
    """patches: [M, K2] bf16 -> [M, 8] f32 slab (boxes | conf | pad)."""
    m, k = patches.shape
    c2 = w2.shape[1]
    ch = wh.shape[1]
    tm, mp = _choose_tile(m)
    xp = _pad_rows(patches, mp)
    kernel = functools.partial(_fused_conv_head_decode_kernel,
                               tm=tm, ho=ho, wo=wo, stride=float(stride))
    out = pl.pallas_call(
        kernel,
        out_shape=jax.ShapeDtypeStruct((mp, OUT_W), jnp.float32),
        grid_spec=pltpu.PrefetchScalarGridSpec(
            num_scalar_prefetch=0,
            grid=(mp // tm,),
            in_specs=[
                pl.BlockSpec((tm, k), lambda i: (i, 0)),
                pl.BlockSpec((k, c2), lambda i: (0, 0)),
                pl.BlockSpec((1, c2), lambda i: (0, 0)),
                pl.BlockSpec((c2, ch), lambda i: (0, 0)),
                pl.BlockSpec((1, ch), lambda i: (0, 0)),
            ],
            out_specs=pl.BlockSpec((tm, OUT_W), lambda i: (i, 0)),
        ),
        compiler_params=pltpu.CompilerParams(dimension_semantics=("parallel",)),
    )(xp, w2, b2.reshape(1, c2).astype(jnp.float32),
      wh, bh.reshape(1, ch).astype(jnp.float32))
    return out[:m]


# ----------------------------------------------------------------------------
# JAX glue: im2col, parameters, full forward
# ----------------------------------------------------------------------------
def im2col(x_nhwc, kh, kw, stride, pad):
    """x: [N, H, W, C] -> patches [N, Ho, Wo, kh*kw*C] (dy, dx, c ordering)."""
    # TODO(synk): move im2col into the kernel via halo-aware row-strip DMA
    # (memory_space=pl.ANY + make_async_copy) to avoid materializing the
    # 9x-duplicated patch tensor in HBM.
    x = jnp.pad(x_nhwc, ((0, 0), (pad, pad), (pad, pad), (0, 0)))
    n, h, w, c = x.shape
    ho = (h - kh) // stride + 1
    wo = (w - kw) // stride + 1
    cols = []
    for dy in range(kh):
        for dx in range(kw):
            cols.append(x[:, dy:dy + stride * ho:stride, dx:dx + stride * wo:stride, :])
    return jnp.concatenate(cols, axis=-1), ho, wo


def init_params(key):
    k1, k2, k3 = jax.random.split(key, 3)

    def conv_w(k, kh, kw, cin, cout):
        scale = 1.0 / jnp.sqrt(kh * kw * cin)
        return jax.random.normal(k, (kh, kw, cin, cout), jnp.float32) * scale

    return {
        "w1": conv_w(k1, 3, 3, 3, 16),  "b1": jnp.zeros((16,), jnp.float32),
        "w2": conv_w(k2, 3, 3, 16, 32), "b2": jnp.zeros((32,), jnp.float32),
        "wh": conv_w(k3, 1, 1, 32, 4 + NUM_CLASSES).reshape(32, 4 + NUM_CLASSES),
        "bh": jnp.zeros((4 + NUM_CLASSES,), jnp.float32),
    }


def yolo_detect_forward(img_nchw, params):
    """Mirrors YOLODetectModel.forward: returns (labels, boxes) lists per image.

    labels[i] == detections column 4 (confidence, as in ultralytics boxes.data[:, 4]);
    boxes[i]  == xyxy box coordinates (boxes.data[:, 0:4]).
    """
    x = jnp.transpose(img_nchw.astype(jnp.float32), (0, 2, 3, 1))  # NCHW -> NHWC
    x = x.astype(jnp.bfloat16)                                     # bf16 MXU feed
    n = x.shape[0]

    # conv1: 3x3/s2 + SiLU  (Pallas bf16 GEMM with fused epilogue)
    p1, ho1, wo1 = im2col(x, 3, 3, stride=2, pad=1)
    c1 = params["b1"].shape[0]
    f1 = gemm_bias_silu(p1.reshape(n * ho1 * wo1, -1),
                        params["w1"].reshape(-1, c1).astype(jnp.bfloat16),
                        params["b1"])
    f1 = f1.reshape(n, ho1, wo1, c1)                               # [N, H/2, W/2, 16]

    # conv2 (3x3/s2 + SiLU) + 1x1 head + decode: one fused Pallas kernel.
    p2, ho2, wo2 = im2col(f1, 3, 3, stride=2, pad=1)
    c2 = params["b2"].shape[0]
    det = fused_conv_head_decode(
        p2.reshape(n * ho2 * wo2, -1),
        params["w2"].reshape(-1, c2).astype(jnp.bfloat16), params["b2"],
        params["wh"].astype(jnp.bfloat16), params["bh"],
        ho=ho2, wo=wo2, stride=4)                                  # total stride 4

    boxes = det[:, 0:4].reshape(n, ho2 * wo2, 4)
    conf = det[:, 4].reshape(n, ho2 * wo2)

    # TODO(synk): confidence thresholding + NMS produce dynamic per-image counts
    # and have no clean static-shape Pallas equivalent; all anchors are returned.
    labels_list = [conf[i] for i in range(n)]
    boxes_list = [boxes[i] for i in range(n)]
    return labels_list, boxes_list


if __name__ == "__main__":
    key = jax.random.PRNGKey(0)
    pkey, ikey = jax.random.split(key)
    params = init_params(pkey)

    # small deterministic "image" batch: NCHW like the PyTorch module's input
    img = jax.random.uniform(ikey, (2, 3, 32, 32), jnp.float32)

    labels, boxes = yolo_detect_forward(img, params)
    jax.block_until_ready(labels)
    jax.block_until_ready(boxes)

    assert len(labels) == 2 and len(boxes) == 2
    assert boxes[0].shape == (8 * 8, 4) and labels[0].shape == (8 * 8,)
    assert bool(jnp.all(jnp.isfinite(boxes[0]))) and bool(jnp.all(jnp.isfinite(labels[0])))
    print("KERNEL_OK")
</pallas_src>

<mosaic_0001>
module attributes {stable_mosaic.version = 11 : i64} {
  func.func @_gemm_bias_silu_kernel(%arg0: i32, %arg1: memref<256x27xbf16, #tpu.memory_space<vmem>>, %arg2: memref<27x16xbf16, #tpu.memory_space<vmem>>, %arg3: memref<1x16xf32, #tpu.memory_space<vmem>>, %arg4: memref<256x16xbf16, #tpu.memory_space<vmem>>) attributes {dimension_semantics = [#tpu.dimension_semantics<parallel>], iteration_bounds = array<i64: 2>, scalar_prefetch = 0 : i64, scratch_operands = 0 : i64, tpu.core_type = #tpu.core_type<tc>, window_params = [{transform_indices = @transform_0, window_bounds = array<i64: 256, 27>}, {pipeline_mode = #tpu.pipeline_mode<synchronous>, transform_indices = @transform_1, window_bounds = array<i64: 27, 16>}, {pipeline_mode = #tpu.pipeline_mode<synchronous>, transform_indices = @transform_2, window_bounds = array<i64: 1, 16>}, {transform_indices = @transform_3, window_bounds = array<i64: 256, 16>}]} {
    %c0 = arith.constant 0 : index
    %c0_0 = arith.constant 0 : index
    %0 = vector.load %arg1[%c0, %c0_0] : memref<256x27xbf16, #tpu.memory_space<vmem>>, vector<256x27xbf16>
    %c0_1 = arith.constant 0 : index
    %c0_2 = arith.constant 0 : index
    %1 = vector.load %arg2[%c0_1, %c0_2] : memref<27x16xbf16, #tpu.memory_space<vmem>>, vector<27x16xbf16>
    %cst = arith.constant dense<0.000000e+00> : vector<256x16xf32>
    %2 = tpu.matmul %0, %1, %cst {dimension_numbers = #tpu.dot_dimension_numbers<[1], [0], [0], [1], [0, 0, 1, 1], [], []>} : vector<256x27xbf16>, vector<27x16xbf16>, vector<256x16xf32> -> vector<256x16xf32>
    %c0_3 = arith.constant 0 : index
    %c0_4 = arith.constant 0 : index
    %3 = vector.load %arg3[%c0_3, %c0_4] : memref<1x16xf32, #tpu.memory_space<vmem>>, vector<1x16xf32>
    %4 = vector.broadcast %3 : vector<1x16xf32> to vector<256x16xf32>
    %5 = arith.addf %2, %4 : vector<256x16xf32>
    %6 = arith.negf %5 : vector<256x16xf32>
    %7 = math.exp %6 : vector<256x16xf32>
    %cst_5 = arith.constant 1.000000e+00 : f32
    %8 = vector.broadcast %cst_5 : f32 to vector<256x16xf32>
    %9 = arith.addf %8, %7 : vector<256x16xf32>
    %10 = arith.divf %8, %9 : vector<256x16xf32>
    %11 = arith.mulf %5, %10 : vector<256x16xf32>
    %12 = arith.truncf %11 : vector<256x16xf32> to vector<256x16xbf16>
    %c0_6 = arith.constant 0 : index
    %c0_7 = arith.constant 0 : index
    %13 = vector.load %arg4[%c0_6, %c0_7] : memref<256x16xbf16, #tpu.memory_space<vmem>>, vector<256x16xbf16>
    tpu.vector_store %arg4[%c0_6, %c0_7], %12 {strides = array<i32>} : memref<256x16xbf16, #tpu.memory_space<vmem>>, vector<256x16xbf16>,
    return
  }
  func.func @transform_0(%arg0: i32) -> (i32, i32) {
    %c0_i32 = arith.constant 0 : i32
    %c0_i32_0 = arith.constant 0 : i32
    return %arg0, %c0_i32 : i32, i32
  }
  func.func @transform_1(%arg0: i32) -> (i32, i32) {
    %c0_i32 = arith.constant 0 : i32
    %c0_i32_0 = arith.constant 0 : i32
    %c0_i32_1 = arith.constant 0 : i32
    return %c0_i32, %c0_i32_0 : i32, i32
  }
  func.func @transform_2(%arg0: i32) -> (i32, i32) {
    %c0_i32 = arith.constant 0 : i32
    %c0_i32_0 = arith.constant 0 : i32
    %c0_i32_1 = arith.constant 0 : i32
    return %c0_i32, %c0_i32_0 : i32, i32
  }
  func.func @transform_3(%arg0: i32) -> (i32, i32) {
    %c0_i32 = arith.constant 0 : i32
    %c0_i32_0 = arith.constant 0 : i32
    return %arg0, %c0_i32 : i32, i32
  }
}

</mosaic_0001>

<llo_original>
// kernel: tpu_custom_call.1
$region0: #{tpu_custom_call.1}
  #allocation0 [shape = 'u32[]', space=smem, size = 0x4, offset = 0x4, fixed_abs, tag = 'smem constant byte address 0x4 - core index']
  #allocation1 [shape = 'u32[144,128]{1,0:T(1,128)}', space=vmem, size = 0x12000, scoped, tag = 'internal scratch']
  %s0 = inlined_call_operand.vmem [shape: bf16[512,27], index: 0, kind: input, shape index: {}]
  %s1 = inlined_call_operand.vmem [shape: bf16[27,16], index: 1, kind: input, shape index: {}]
  %s2 = inlined_call_operand.vmem [shape: f32[1,16], index: 2, kind: input, shape index: {}]
  %s3 = inlined_call_operand.vmem [shape: bf16[512,16], index: 3, kind: output, shape index: {}]
  %s4 = sld [smem:[#allocation0]]
  $region45: #{tpu_custom_call.1} parent=0
    _
  %s6 = ssub.s32 1, %s4
  %s7 = scalar_select 0, %s6, %s4
  loop: start=0, step=1, limit=4
  $region2: #{tpu_custom_call.1} parent=0 // loop_pre_header
    _
  $region3: #{tpu_custom_call.1} parent=0 // loop_header
    %s9 = sphi 0, %s13
    %p10 = scmp.ge.s32.totalorder %s9, 4
    %s19 = sphi 0, %s21
    %s22 = sphi 0, %s19
    %s23 = sphi 0, %s22
    %s39 = sphi 0, %s23
    %s43 = sphi 0, %s43
    %s45 = sphi 0, %s43
    %s46 = sphi 0, %s45
    %s60 = sphi 0, %s46
    %s64 = sphi 0, %s64
    %s66 = sphi 0, %s64
    %s67 = sphi 0, %s66
    %s81 = sphi 0, %s67
    %s87 = sphi 0, %s89
    %s90 = sphi 0, %s87
    %s91 = sphi 0, %s90
    %s107 = sphi 0, %s91
  $region4: #{tpu_custom_call.1} parent=0 // loop_header_branch
    %12 = sbr.rel (%p10) target = $region8
  $region5: #{tpu_custom_call.1} parent=0 // loop_body
    %s14 = ssub.s32 %s9, 1
    %s15 = ssub.s32 %s9, 2
    %s16 = sadd.s32 %s9, 1
    %s17 = ssub.s32 %s9, %s16
    %p18 = scmp.eq.s32.totalorder %s17, 0
    %s20 = sadd.s32 %s19, 1
    %s21 = scalar_select %p18, %s19, %s20
    %p24 = pneg %p18
    %p25 = scmp.eq.s32.totalorder %s9, 1
    %p26 = por %p24, %p25
    %p27 = scmp.ne.s32.totalorder %s19, %s22
    %p28 = scmp.eq.s32.totalorder %s9, 0
    %p29 = por %p27, %p28
    %p30 = scmp.ne.s32.totalorder %s19, %s22
    %p31 = scmp.eq.s32.totalorder %s14, 1
    %p32 = por %p30, %p31
    %p33 = scmp.ne.s32.totalorder %s22, %s23
    %p34 = scmp.eq.s32.totalorder %s14, 0
    %p35 = por %p33, %p34
    %p36 = scmp.ne.s32.totalorder %s22, %s23
    %p37 = scmp.eq.s32.totalorder %s15, 1
    %p38 = por %p36, %p37
    %p40 = scmp.ne.s32.totalorder %s23, %s39
    %p41 = scmp.eq.s32.totalorder %s15, 0
    %p42 = por %p40, %p41
    %s44 = sadd.s32 %s43, 1
    %p47 = scmp.eq.s32.totalorder %s9, 1
    %p48 = scmp.ne.s32.totalorder %s43, %s45
    %p49 = scmp.eq.s32.totalorder %s9, 0
    %p50 = por %p48, %p49
    %p51 = scmp.ne.s32.totalorder %s43, %s45
    %p52 = scmp.eq.s32.totalorder %s14, 1
    %p53 = por %p51, %p52
    %p54 = scmp.ne.s32.totalorder %s45, %s46
    %p55 = scmp.eq.s32.totalorder %s14, 0
    %p56 = por %p54, %p55
    %p57 = scmp.ne.s32.totalorder %s45, %s46
    %p58 = scmp.eq.s32.totalorder %s15, 1
    %p59 = por %p57, %p58
    %p61 = scmp.ne.s32.totalorder %s46, %s60
    %p62 = scmp.eq.s32.totalorder %s15, 0
    %p63 = por %p61, %p62
    %s65 = sadd.s32 %s64, 1
    %p68 = scmp.eq.s32.totalorder %s9, 1
    %p69 = scmp.ne.s32.totalorder %s64, %s66
    %p70 = scmp.eq.s32.totalorder %s9, 0
    %p71 = por %p69, %p70
    %p72 = scmp.ne.s32.totalorder %s64, %s66
    %p73 = scmp.eq.s32.totalorder %s14, 1
    %p74 = por %p72, %p73
    %p75 = scmp.ne.s32.totalorder %s66, %s67
    %p76 = scmp.eq.s32.totalorder %s14, 0
    %p77 = por %p75, %p76
    %p78 = scmp.ne.s32.totalorder %s66, %s67
    %p79 = scmp.eq.s32.totalorder %s15, 1
    %p80 = por %p78, %p79
    %p82 = scmp.ne.s32.totalorder %s67, %s81
    %p83 = scmp.eq.s32.totalorder %s15, 0
    %p84 = por %p82, %p83
    %s85 = ssub.s32 %s9, %s16
    %p86 = scmp.eq.s32.totalorder %s85, 0
    %s88 = sadd.s32 %s87, 1
    %s89 = scalar_select %p86, %s87, %s88
    %p92 = pneg %p86
    %p93 = scmp.eq.s32.totalorder %s9, 1
    %p94 = por %p92, %p93
    %p95 = scmp.ne.s32.totalorder %s87, %s90
    %p96 = scmp.eq.s32.totalorder %s9, 0
    %p97 = por %p95, %p96
    %p98 = scmp.ne.s32.totalorder %s87, %s90
    %p99 = scmp.eq.s32.totalorder %s14, 1
    %p100 = por %p98, %p99
    %p101 = scmp.ne.s32.totalorder %s90, %s91
    %p102 = scmp.eq.s32.totalorder %s14, 0
    %p103 = por %p101, %p102
    %p104 = scmp.ne.s32.totalorder %s90, %s91
    %p105 = scmp.eq.s32.totalorder %s15, 1
    %p106 = por %p104, %p105
    %p108 = scmp.ne.s32.totalorder %s91, %s107
    %p109 = scmp.eq.s32.totalorder %s15, 0
    %p110 = por %p108, %p109
    %p111 = scmp.le.s32.totalorder 1, %s9
    %p112 = scmp.lt.s32.totalorder %s9, 3
    %p113 = pnand %p111, %p112
    %p114 = pneg %p113
    // Predicated region
    $region9: #{tpu_custom_call.1} parent=5 // pred_check
      _
    $region10: #{tpu_custom_call.1} parent=5 // pred_check_branch
      %116 = sbr.rel (%p113) target = $region12
    $region11: #{tpu_custom_call.1} parent=5 // pred_region
      %s117 = ssub.s32 %s9, 1
      // Predicated region
      $region13: #{tpu_custom_call.1} parent=11 // pred_check
        %p118 = pneg %p56
      $region14: #{tpu_custom_call.1} parent=11 // pred_check_branch
        %120 = sbr.rel (%p118) target = $region16
      $region15: #{tpu_custom_call.1} parent=11 // pred_region
        _
      $region16: #{tpu_custom_call.1} parent=11 // pred_fallthru
        _
      // Predicated region
      $region17: #{tpu_custom_call.1} parent=11 // pred_check
        %p121 = pneg %p77
      $region18: #{tpu_custom_call.1} parent=11 // pred_check_branch
        %123 = sbr.rel (%p121) target = $region20
      $region19: #{tpu_custom_call.1} parent=11 // pred_region
        _
      $region20: #{tpu_custom_call.1} parent=11 // pred_fallthru
        _
    $region12: #{tpu_custom_call.1} parent=5 // pred_fallthru
      _
    %p124 = scmp.lt.s32.totalorder %s9, 2
    // Predicated region
    $region21: #{tpu_custom_call.1} parent=5 // pred_check
      %p125 = pneg %p124
    $region22: #{tpu_custom_call.1} parent=5 // pred_check_branch
      %127 = sbr.rel (%p125) target = $region24
    $region23: #{tpu_custom_call.1} parent=5 // pred_region
      // Predicated region
      $region25: #{tpu_custom_call.1} parent=23 // pred_check
        %p128 = pneg %p29
      $region26: #{tpu_custom_call.1} parent=23 // pred_check_branch
        %130 = sbr.rel (%p128) target = $region28
      $region27: #{tpu_custom_call.1} parent=23 // pred_region
        %s131 = smul.u32 32, %s9
        %p132 = scmp.lt.s32.totalorder %s131, 63
        %s133 = scalar_select %p132, %s131, 63
        %s134 = smul.addr %s133, 4
        %s135 = scalar_lea.vmem %s0, %s134
        %s136 = smul.u32 32, %s9
      $region28: #{tpu_custom_call.1} parent=23 // pred_fallthru
        _
    $region24: #{tpu_custom_call.1} parent=5 // pred_fallthru
      _
    %p137 = scmp.le.s32.totalorder 1, %s9
    %p138 = scmp.lt.s32.totalorder %s9, 3
    %p139 = pnand %p137, %p138
    %p140 = pneg %p139
    // Predicated region
    $region29: #{tpu_custom_call.1} parent=5 // pred_check
      _
    $region30: #{tpu_custom_call.1} parent=5 // pred_check_branch
      %142 = sbr.rel (%p139) target = $region32
    $region31: #{tpu_custom_call.1} parent=5 // pred_region
      %s143 = ssub.s32 %s9, 1
      %s144 = smul.u32 32, %s14
      %p145 = scmp.lt.s32.totalorder %s144, 63
      %s146 = scalar_select %p145, %s144, 63
      %s147 = smul.addr %s146, 4
      %s148 = scalar_lea.vmem %s0, %s147
      %p149 = pneg %p35
      %p150 = pneg %p32
      %p151 = pneg %p56
      %p152 = pneg %p53
      %p153 = pneg %p77
      %p154 = pneg %p74
      %p155 = pneg %p103
      %p156 = pneg %p100
      %s157 = smul.u32 32, %s14
      %p158 = scmp.lt.s32.totalorder %s157, 63
      %s159 = scalar_select %p158, %s157, 63
      %s160 = smul.addr %s159, 4
      %s161 = scalar_lea.vmem %s3, %s160
      %s162 = smul.u32 32, %s14
      %p163 = scmp.lt.s32.totalorder %s162, 63
      %s164 = scalar_select %p163, %s162, 63
      %s165 = smul.addr %s164, 4
      %s166 = scalar_lea.vmem %s0, %s165
      %s167 = smul.u32 32, %s14
      %s168 = smul.u32 32, %s14
      %p169 = scmp.lt.s32.totalorder %s168, 63
      %s170 = scalar_select %p169, %s168, 63
      %s171 = smul.addr %s170, 4
      %s172 = scalar_lea.vmem %s3, %s171
      %s173 = smul.u32 32, %s14
      %v175 = vld [vmem:[%s166] sm:$0xf]
      %v176 = vld [vmem:[%s166 + $0x4] sm:$0xf]
      %v177 = vld [vmem:[%s166 + $0x8] sm:$0xf]
      %v178 = vld [vmem:[%s166 + $0xc] sm:$0xf]
      %v179 = vld [vmem:[%s166 + $0x10] sm:$0xf]
      %v180 = vld [vmem:[%s166 + $0x14] sm:$0xf]
      %v181 = vld [vmem:[%s166 + $0x18] sm:$0xf]
      %v182 = vld [vmem:[%s166 + $0x1c] sm:$0xf]
      %v183 = vld [vmem:[%s166 + $0x20] sm:$0xf]
      %v184 = vld [vmem:[%s166 + $0x24] sm:$0xf]
      %v185 = vld [vmem:[%s166 + $0x28] sm:$0xf]
      %v186 = vld [vmem:[%s166 + $0x2c] sm:$0xf]
      %v187 = vld [vmem:[%s166 + $0x30] sm:$0xf]
      %v188 = vld [vmem:[%s166 + $0x34] sm:$0xf]
      %v189 = vld [vmem:[%s166 + $0x38] sm:$0xf]
      %v190 = vld [vmem:[%s166 + $0x3c] sm:$0xf]
      %v191 = vld [vmem:[%s166 + $0x40] sm:$0xf]
      %v192 = vld [vmem:[%s166 + $0x44] sm:$0xf]
      %v193 = vld [vmem:[%s166 + $0x48] sm:$0xf]
      %v194 = vld [vmem:[%s166 + $0x4c] sm:$0xf]
      %v195 = vld [vmem:[%s166 + $0x50] sm:$0xf]
      %v196 = vld [vmem:[%s166 + $0x54] sm:$0xf]
      %v197 = vld [vmem:[%s166 + $0x58] sm:$0xf]
      %v198 = vld [vmem:[%s166 + $0x5c] sm:$0xf]
      %v199 = vld [vmem:[%s166 + $0x60] sm:$0xf]
      %v200 = vld [vmem:[%s166 + $0x64] sm:$0xf]
      %v201 = vld [vmem:[%s166 + $0x68] sm:$0xf]
      %v202 = vld [vmem:[%s166 + $0x6c] sm:$0xf]
      %v203 = vld [vmem:[%s166 + $0x70] sm:$0xf]
      %v204 = vld [vmem:[%s166 + $0x74] sm:$0xf]
      %v205 = vld [vmem:[%s166 + $0x78] sm:$0xf]
      %v206 = vld [vmem:[%s166 + $0x7c] sm:$0xf]
      %v207 = vld [vmem:[%s1] sm:$0xf]
      %v208 = vld [vmem:[%s1 + $0x4] sm:$0xf]
      %v209 = vld [vmem:[%s1 + $0x8] sm:$0xf]
      %v210 = vld [vmem:[%s1 + $0xc] sm:$0x3]
      %v211 = vld [vmem:[%s2] sm:$0x1]
      %v213 = vlaneseq
      %v214 = vshrl.u32 %v213, 7
      %v215 = vsub.s32 0, %v214
      %v216 = vrot.slane %v211, %v215
      %v250 = vunpack.c.l.b16 %v175
      %v251 = vunpack.c.l.b16 %v176
      %v252 = vunpack.c.l.b16 %v177
      %v253 = vunpack.c.l.b16 %v178
      %v254 = vunpack.c.l.b16 %v179
      %v255 = vunpack.c.l.b16 %v180
      %v256 = vunpack.c.l.b16 %v181
      %v257 = vunpack.c.l.b16 %v182
      %v258 = vunpack.c.l.b16 %v183
      %v259 = vunpack.c.l.b16 %v184
      %v260 = vunpack.c.l.b16 %v185
      %v261 = vunpack.c.l.b16 %v186
      %v262 = vunpack.c.l.b16 %v187
      %v263 = vunpack.c.l.b16 %v188
      %v264 = vunpack.c.l.b16 %v189
      %v265 = vunpack.c.l.b16 %v190
      %v266 = vunpack.c.l.b16 %v191
      %v267 = vunpack.c.l.b16 %v192
      %v268 = vunpack.c.l.b16 %v193
      %v269 = vunpack.c.l.b16 %v194
      %v270 = vunpack.c.l.b16 %v195
      %v271 = vunpack.c.l.b16 %v196
      %v272 = vunpack.c.l.b16 %v197
      %v273 = vunpack.c.l.b16 %v198
      %v274 = vunpack.c.l.b16 %v199
      %v275 = vunpack.c.l.b16 %v200
      %v276 = vunpack.c.l.b16 %v201
      %v277 = vunpack.c.l.b16 %v202
      %v278 = vunpack.c.l.b16 %v203
      %v279 = vunpack.c.l.b16 %v204
      %v280 = vunpack.c.l.b16 %v205
      %v281 = vunpack.c.l.b16 %v206
      %v282 = vpack.c.b16 %v251, %v250
      %v283 = vpack.c.b16 %v253, %v252
      %v284 = vpack.c.b16 %v255, %v254
      %v285 = vpack.c.b16 %v257, %v256
      %v286 = vpack.c.b16 %v259, %v258
      %v287 = vpack.c.b16 %v261, %v260
      %v288 = vpack.c.b16 %v263, %v262
      %v289 = vpack.c.b16 %v265, %v264
      %v290 = vpack.c.b16 %v267, %v266
      %v291 = vpack.c.b16 %v269, %v268
      %v292 = vpack.c.b16 %v271, %v270
      %v293 = vpack.c.b16 %v273, %v272
      %v294 = vpack.c.b16 %v275, %v274
      %v295 = vpack.c.b16 %v277, %v276
      %v296 = vpack.c.b16 %v279, %v278
      %v297 = vpack.c.b16 %v281, %v280
      %v302 = vunpack.c.l.b16 %v207
      %v303 = vunpack.c.l.b16 %v208
      %v304 = vunpack.c.l.b16 %v209
      %v305 = vunpack.c.l.b16 %v210
      %v306 = vpack.c.b16 %v303, %v302
      %v307 = vpack.c.b16 %v305, %v304
      %vm309 = vcmask 220160
      %v311 = vsel %vm309, %v282, 0
      %v314 = vsel %vm309, %v283, 0
      %v317 = vsel %vm309, %v284, 0
      %v320 = vsel %vm309, %v285, 0
      %v323 = vsel %vm309, %v286, 0
      %v326 = vsel %vm309, %v287, 0
      %v329 = vsel %vm309, %v288, 0
      %v332 = vsel %vm309, %v289, 0
      %v335 = vsel %vm309, %v290, 0
      %v338 = vsel %vm309, %v291, 0
      %v341 = vsel %vm309, %v292, 0
      %v344 = vsel %vm309, %v293, 0
      %v347 = vsel %vm309, %v294, 0
      %v350 = vsel %vm309, %v295, 0
      %v353 = vsel %vm309, %v296, 0
      %v356 = vsel %vm309, %v297, 0
      %vm358 = vcmask 1044480
      %vm359 = vcmask 1045504
      %v360 = vsel %vm358, 4294967295, 65535
      %v361 = vsel %vm359, %v360, 0
      %v363 = vand.u32 %v307, %v361
      %365 = vmatprep.subr.bf16.mxu0 0
      %366 = vmatpush1.bf16.msra.mxu0 %v306
      %367 = vmatprep.subr.bf16.mxu0 0
      %368 = vmatpush1.bf16.msra.mxu0 %v363
      %369 = vmatprep.subr.bf16.mxu0 0
      %370 = vmatpush1.bf16.msra.mxu0 0
      %371 = vmatprep.subr.bf16.mxu0 0
      %372 = vmatpush1.bf16.msra.mxu0 0
      %373 = vmatprep.subr.bf16.mxu0 0
      %374 = vmatpush1.bf16.msra.mxu0 0
      %375 = vmatprep.subr.bf16.mxu0 0
      %376 = vmatpush1.bf16.msra.mxu0 0
      %377 = vmatprep.subr.bf16.mxu0 0
      %378 = vmatpush1.bf16.msra.mxu0 0
      %379 = vmatprep.subr.bf16.mxu0 0
      %380 = vmatpush1.bf16.msra.mxu0 0
      %381 = vmatprep.subr.bf16.mxu0 0
      %382 = vmatpush1.bf16.msra.mxu0 0
      %383 = vmatprep.subr.bf16.mxu0 0
      %384 = vmatpush1.bf16.msra.mxu0 0
      %385 = vmatprep.subr.bf16.mxu0 0
      %386 = vmatpush1.bf16.msra.mxu0 0
      %387 = vmatprep.subr.bf16.mxu0 0
      %388 = vmatpush1.bf16.msra.mxu0 0
      %389 = vmatprep.subr.bf16.mxu0 0
      %390 = vmatpush1.bf16.msra.mxu0 0
      %391 = vmatprep.subr.bf16.mxu0 0
      %392 = vmatpush1.bf16.msra.mxu0 0
      %393 = vmatprep.subr.bf16.mxu0 0
      %394 = vmatpush1.bf16.msra.mxu0 0
      %395 = vmatprep.subr.bf16.mxu0 0
      %396 = vmatpush1.bf16.msra.mxu0 0
      %397 = vmatprep.mubr.bf16.mxu0 0
      %398 = vmatmul.mubr.bf16.gmra.mrb[0].mxu0 %v311
      %v399 = vpop.f32.mrb[0].mxu0
      %v400 = vadd.f32 %v216, %v399
      %v401 = vpop.f32.mrb[0].mxu0
      %v402 = vpop.f32.mrb[0].mxu0
      %v403 = vadd.f32 %v216, %v402
      %v404 = vpop.f32.mrb[0].mxu0
      %405 = vmatprep.mubr.bf16.mxu0 0
      %406 = vmatmul.mubr.bf16.gmra.mrb[0].mxu0 %v314
      %v407 = vpop.f32.mrb[0].mxu0
      %v408 = vadd.f32 %v216, %v407
      %v409 = vpop.f32.mrb[0].mxu0
      %v410 = vpop.f32.mrb[0].mxu0
      %v411 = vadd.f32 %v216, %v410
      %v412 = vpop.f32.mrb[0].mxu0
      %413 = vmatprep.mubr.bf16.mxu0 0
      %414 = vmatmul.mubr.bf16.gmra.mrb[0].mxu0 %v317
      %v415 = vpop.f32.mrb[0].mxu0
      %v416 = vadd.f32 %v216, %v415
      %v417 = vpop.f32.mrb[0].mxu0
      %v418 = vpop.f32.mrb[0].mxu0
      %v419 = vadd.f32 %v216, %v418
      %v420 = vpop.f32.mrb[0].mxu0
      %421 = vmatprep.mubr.bf16.mxu0 0
      %422 = vmatmul.mubr.bf16.gmra.mrb[0].mxu0 %v320
      %v423 = vpop.f32.mrb[0].mxu0
      %v424 = vadd.f32 %v216, %v423
      %v425 = vpop.f32.mrb[0].mxu0
      %v426 = vpop.f32.mrb[0].mxu0
      %v427 = vadd.f32 %v216, %v426
      %v428 = vpop.f32.mrb[0].mxu0
      %429 = vmatprep.mubr.bf16.mxu0 0
      %430 = vmatmul.mubr.bf16.gmra.mrb[0].mxu0 %v323
      %v431 = vpop.f32.mrb[0].mxu0
      %v432 = vadd.f32 %v216, %v431
      %v433 = vpop.f32.mrb[0].mxu0
      %v434 = vpop.f32.mrb[0].mxu0
      %v435 = vadd.f32 %v216, %v434
      %v436 = vpop.f32.mrb[0].mxu0
      %437 = vmatprep.mubr.bf16.mxu0 0
      %438 = vmatmul.mubr.bf16.gmra.mrb[0].mxu0 %v326
      %v439 = vpop.f32.mrb[0].mxu0
      %v440 = vadd.f32 %v216, %v439
      %v441 = vpop.f32.mrb[0].mxu0
      %v442 = vpop.f32.mrb[0].mxu0
      %v443 = vadd.f32 %v216, %v442
      %v444 = vpop.f32.mrb[0].mxu0
      %445 = vmatprep.mubr.bf16.mxu0 0
      %446 = vmatmul.mubr.bf16.gmra.mrb[0].mxu0 %v329
      %v447 = vpop.f32.mrb[0].mxu0
      %v448 = vadd.f32 %v216, %v447
      %v449 = vpop.f32.mrb[0].mxu0
      %v450 = vpop.f32.mrb[0].mxu0
      %v451 = vadd.f32 %v216, %v450
      %v452 = vpop.f32.mrb[0].mxu0
      %453 = vmatprep.mubr.bf16.mxu0 0
      %454 = vmatmul.mubr.bf16.gmra.mrb[0].mxu0 %v332
      %v455 = vpop.f32.mrb[0].mxu0
      %v456 = vadd.f32 %v216, %v455
      %v457 = vpop.f32.mrb[0].mxu0
      %v458 = vpop.f32.mrb[0].mxu0
      %v459 = vadd.f32 %v216, %v458
      %v460 = vpop.f32.mrb[0].mxu0
      %461 = vmatprep.mubr.bf16.mxu0 0
      %462 = vmatmul.mubr.bf16.gmra.mrb[0].mxu0 %v335
      %v463 = vpop.f32.mrb[0].mxu0
      %v464 = vadd.f32 %v216, %v463
      %v465 = vpop.f32.mrb[0].mxu0
      %v466 = vpop.f32.mrb[0].mxu0
      %v467 = vadd.f32 %v216, %v466
      %v468 = vpop.f32.mrb[0].mxu0
      %469 = vmatprep.mubr.bf16.mxu0 0
      %470 = vmatmul.mubr.bf16.gmra.mrb[0].mxu0 %v338
      %v471 = vpop.f32.mrb[0].mxu0
      %v472 = vadd.f32 %v216, %v471
      %v473 = vpop.f32.mrb[0].mxu0
      %v474 = vpop.f32.mrb[0].mxu0
      %v475 = vadd.f32 %v216, %v474
      %v476 = vpop.f32.mrb[0].mxu0
      %477 = vmatprep.mubr.bf16.mxu0 0
      %478 = vmatmul.mubr.bf16.gmra.mrb[0].mxu0 %v341
      %v479 = vpop.f32.mrb[0].mxu0
      %v480 = vadd.f32 %v216, %v479
      %v481 = vpop.f32.mrb[0].mxu0
      %v482 = vpop.f32.mrb[0].mxu0
      %v483 = vadd.f32 %v216, %v482
      %v484 = vpop.f32.mrb[0].mxu0
      %485 = vmatprep.mubr.bf16.mxu0 0
      %486 = vmatmul.mubr.bf16.gmra.mrb[0].mxu0 %v344
      %v487 = vpop.f32.mrb[0].mxu0
      %v488 = vadd.f32 %v216, %v487
      %v489 = vpop.f32.mrb[0].mxu0
      %v490 = vpop.f32.mrb[0].mxu0
      %v491 = vadd.f32 %v216, %v490
      %v492 = vpop.f32.mrb[0].mxu0
      %493 = vmatprep.mubr.bf16.mxu0 0
      %494 = vmatmul.mubr.bf16.gmra.mrb[0].mxu0 %v347
      %v495 = vpop.f32.mrb[0].mxu0
      %v496 = vadd.f32 %v216, %v495
      %v497 = vpop.f32.mrb[0].mxu0
      %v498 = vpop.f32.mrb[0].mxu0
      %v499 = vadd.f32 %v216, %v498
      %v500 = vpop.f32.mrb[0].mxu0
      %501 = vmatprep.mubr.bf16.mxu0 0
      %502 = vmatmul.mubr.bf16.gmra.mrb[0].mxu0 %v350
      %v503 = vpop.f32.mrb[0].mxu0
      %v504 = vadd.f32 %v216, %v503
      %v505 = vpop.f32.mrb[0].mxu0
      %v506 = vpop.f32.mrb[0].mxu0
      %v507 = vadd.f32 %v216, %v506
      %v508 = vpop.f32.mrb[0].mxu0
      %509 = vmatprep.mubr.bf16.mxu0 0
      %510 = vmatmul.mubr.bf16.gmra.mrb[0].mxu0 %v353
      %v511 = vpop.f32.mrb[0].mxu0
      %v512 = vadd.f32 %v216, %v511
      %v513 = vpop.f32.mrb[0].mxu0
      %v514 = vpop.f32.mrb[0].mxu0
      %v515 = vadd.f32 %v216, %v514
      %v516 = vpop.f32.mrb[0].mxu0
      %517 = vmatprep.mubr.bf16.mxu0 0
      %518 = vmatmul.mubr.bf16.gmra.mrb[0].mxu0 %v356
      %v519 = vpop.f32.mrb[0].mxu0
      %v520 = vadd.f32 %v216, %v519
      %v521 = vpop.f32.mrb[0].mxu0
      %v522 = vpop.f32.mrb[0].mxu0
      %v523 = vadd.f32 %v216, %v522
      %v524 = vpop.f32.mrb[0].mxu0
      %525 = vdwg.mxu0
      %v526 = vxor.u32 %v400, 2147483648
      %v527 = vxor.u32 %v403, 2147483648
      %v528 = vxor.u32 %v408, 2147483648
      %v529 = vxor.u32 %v411, 2147483648
      %v530 = vxor.u32 %v416, 2147483648
      %v531 = vxor.u32 %v419, 2147483648
      %v532 = vxor.u32 %v424, 2147483648
      %v533 = vxor.u32 %v427, 2147483648
      %v534 = vxor.u32 %v432, 2147483648
      %v535 = vxor.u32 %v435, 2147483648
      %v536 = vxor.u32 %v440, 2147483648
      %v537 = vxor.u32 %v443, 2147483648
      %v538 = vxor.u32 %v448, 2147483648
      %v539 = vxor.u32 %v451, 2147483648
      %v540 = vxor.u32 %v456, 2147483648
      %v541 = vxor.u32 %v459, 2147483648
      %v542 = vxor.u32 %v464, 2147483648
      %v543 = vxor.u32 %v467, 2147483648
      %v544 = vxor.u32 %v472, 2147483648
      %v545 = vxor.u32 %v475, 2147483648
      %v546 = vxor.u32 %v480, 2147483648
      %v547 = vxor.u32 %v483, 2147483648
      %v548 = vxor.u32 %v488, 2147483648
      %v549 = vxor.u32 %v491, 2147483648
      %v550 = vxor.u32 %v496, 2147483648
      %v551 = vxor.u32 %v499, 2147483648
      %v552 = vxor.u32 %v504, 2147483648
      %v553 = vxor.u32 %v507, 2147483648
      %v554 = vxor.u32 %v512, 2147483648
      %v555 = vxor.u32 %v515, 2147483648
      %v556 = vxor.u32 %v520, 2147483648
      %v557 = vxor.u32 %v523, 2147483648
      %v558 = vmul.f32 %v526, 1.442695
      %v559 = vpow.pop %v558
      %v560 = vmul.f32 %v527, 1.442695
      %v561 = vpow.pop %v560
      %v562 = vmul.f32 %v528, 1.442695
      %v563 = vpow.pop %v562
      %v564 = vmul.f32 %v529, 1.442695
      %v565 = vpow.pop %v564
      %v566 = vmul.f32 %v530, 1.442695
      %v567 = vpow.pop %v566
      %v568 = vmul.f32 %v531, 1.442695
      %v569 = vpow.pop %v568
      %v570 = vmul.f32 %v532, 1.442695
      %v571 = vpow.pop %v570
      %v572 = vmul.f32 %v533, 1.442695
      %v573 = vpow.pop %v572
      %v574 = vmul.f32 %v534, 1.442695
      %v575 = vpow.pop %v574
      %v576 = vmul.f32 %v535, 1.442695
      %v577 = vpow.pop %v576
      %v578 = vmul.f32 %v536, 1.442695
      %v579 = vpow.pop %v578
      %v580 = vmul.f32 %v537, 1.442695
      %v581 = vpow.pop %v580
      %v582 = vmul.f32 %v538, 1.442695
      %v583 = vpow.pop %v582
      %v584 = vmul.f32 %v539, 1.442695
      %v585 = vpow.pop %v584
      %v586 = vmul.f32 %v540, 1.442695
      %v587 = vpow.pop %v586
      %v588 = vmul.f32 %v541, 1.442695
      %v589 = vpow.pop %v588
      %v590 = vmul.f32 %v542, 1.442695
      %v591 = vpow.pop %v590
      %v592 = vmul.f32 %v543, 1.442695
      %v593 = vpow.pop %v592
      %v594 = vmul.f32 %v544, 1.442695
      %v595 = vpow.pop %v594
      %v596 = vmul.f32 %v545, 1.442695
      %v597 = vpow.pop %v596
      %v598 = vmul.f32 %v546, 1.442695
      %v599 = vpow.pop %v598
      %v600 = vmul.f32 %v547, 1.442695
      %v601 = vpow.pop %v600
      %v602 = vmul.f32 %v548, 1.442695
      %v603 = vpow.pop %v602
      %v604 = vmul.f32 %v549, 1.442695
      %v605 = vpow.pop %v604
      %v606 = vmul.f32 %v550, 1.442695
      %v607 = vpow.pop %v606
      %v608 = vmul.f32 %v551, 1.442695
      %v609 = vpow.pop %v608
      %v610 = vmul.f32 %v552, 1.442695
      %v611 = vpow.pop %v610
      %v612 = vmul.f32 %v553, 1.442695
      %v613 = vpow.pop %v612
      %v614 = vmul.f32 %v554, 1.442695
      %v615 = vpow.pop %v614
      %v616 = vmul.f32 %v555, 1.442695
      %v617 = vpow.pop %v616
      %v618 = vmul.f32 %v556, 1.442695
      %v619 = vpow.pop %v618
      %v620 = vmul.f32 %v557, 1.442695
      %v621 = vpow.pop %v620
      %v622 = vadd.f32 %v559, 1.0
      %v623 = vadd.f32 %v561, 1.0
      %v624 = vadd.f32 %v563, 1.0
      %v625 = vadd.f32 %v565, 1.0
      %v626 = vadd.f32 %v567, 1.0
      %v627 = vadd.f32 %v569, 1.0
      %v628 = vadd.f32 %v571, 1.0
      %v629 = vadd.f32 %v573, 1.0
      %v630 = vadd.f32 %v575, 1.0
      %v631 = vadd.f32 %v577, 1.0
      %v632 = vadd.f32 %v579, 1.0
      %v633 = vadd.f32 %v581, 1.0
      %v634 = vadd.f32 %v583, 1.0
      %v635 = vadd.f32 %v585, 1.0
      %v636 = vadd.f32 %v587, 1.0
      %v637 = vadd.f32 %v589, 1.0
      %v638 = vadd.f32 %v591, 1.0
      %v639 = vadd.f32 %v593, 1.0
      %v640 = vadd.f32 %v595, 1.0
      %v641 = vadd.f32 %v597, 1.0
      %v642 = vadd.f32 %v599, 1.0
      %v643 = vadd.f32 %v601, 1.0
      %v644 = vadd.f32 %v603, 1.0
      %v645 = vadd.f32 %v605, 1.0
      %v646 = vadd.f32 %v607, 1.0
      %v647 = vadd.f32 %v609, 1.0
      %v648 = vadd.f32 %v611, 1.0
      %v649 = vadd.f32 %v613, 1.0
      %v650 = vadd.f32 %v615, 1.0
      %v651 = vadd.f32 %v617, 1.0
      %v652 = vadd.f32 %v619, 1.0
      %v653 = vadd.f32 %v621, 1.0
      %v654 = vrcp.pop %v622
      %v655 = vmul.f32 1.0, %v654
      %v656 = vrcp.pop %v623
      %v657 = vmul.f32 1.0, %v656
      %v658 = vrcp.pop %v624
      %v659 = vmul.f32 1.0, %v658
      %v660 = vrcp.pop %v625
      %v661 = vmul.f32 1.0, %v660
      %v662 = vrcp.pop %v626
      %v663 = vmul.f32 1.0, %v662
      %v664 = vrcp.pop %v627
      %v665 = vmul.f32 1.0, %v664
      %v666 = vrcp.pop %v628
      %v667 = vmul.f32 1.0, %v666
      %v668 = vrcp.pop %v629
      %v669 = vmul.f32 1.0, %v668
      %v670 = vrcp.pop %v630
      %v671 = vmul.f32 1.0, %v670
      %v672 = vrcp.pop %v631
      %v673 = vmul.f32 1.0, %v672
      %v674 = vrcp.pop %v632
      %v675 = vmul.f32 1.0, %v674
      %v676 = vrcp.pop %v633
      %v677 = vmul.f32 1.0, %v676
      %v678 = vrcp.pop %v634
      %v679 = vmul.f32 1.0, %v678
      %v680 = vrcp.pop %v635
      %v681 = vmul.f32 1.0, %v680
      %v682 = vrcp.pop %v636
      %v683 = vmul.f32 1.0, %v682
      %v684 = vrcp.pop %v637
      %v685 = vmul.f32 1.0, %v684
      %v686 = vrcp.pop %v638
      %v687 = vmul.f32 1.0, %v686
      %v688 = vrcp.pop %v639
      %v689 = vmul.f32 1.0, %v688
      %v690 = vrcp.pop %v640
      %v691 = vmul.f32 1.0, %v690
      %v692 = vrcp.pop %v641
      %v693 = vmul.f32 1.0, %v692
      %v694 = vrcp.pop %v642
      %v695 = vmul.f32 1.0, %v694
      %v696 = vrcp.pop %v643
      %v697 = vmul.f32 1.0, %v696
      %v698 = vrcp.pop %v644
      %v699 = vmul.f32 1.0, %v698
      %v700 = vrcp.pop %v645
      %v701 = vmul.f32 1.0, %v700
      %v702 = vrcp.pop %v646
      %v703 = vmul.f32 1.0, %v702
      %v704 = vrcp.pop %v647
      %v705 = vmul.f32 1.0, %v704
      %v706 = vrcp.pop %v648
      %v707 = vmul.f32 1.0, %v706
      %v708 = vrcp.pop %v649
      %v709 = vmul.f32 1.0, %v708
      %v710 = vrcp.pop %v650
      %v711 = vmul.f32 1.0, %v710
      %v712 = vrcp.pop %v651
      %v713 = vmul.f32 1.0, %v712
      %v714 = vrcp.pop %v652
      %v715 = vmul.f32 1.0, %v714
      %v716 = vrcp.pop %v653
      %v717 = vmul.f32 1.0, %v716
      %v718 = vmul.f32 %v400, %v655
      %v719 = vmul.f32 %v403, %v657
      %v720 = vmul.f32 %v408, %v659
      %v721 = vmul.f32 %v411, %v661
      %v722 = vmul.f32 %v416, %v663
      %v723 = vmul.f32 %v419, %v665
      %v724 = vmul.f32 %v424, %v667
      %v725 = vmul.f32 %v427, %v669
      %v726 = vmul.f32 %v432, %v671
      %v727 = vmul.f32 %v435, %v673
      %v728 = vmul.f32 %v440, %v675
      %v729 = vmul.f32 %v443, %v677
      %v730 = vmul.f32 %v448, %v679
      %v731 = vmul.f32 %v451, %v681
      %v732 = vmul.f32 %v456, %v683
      %v733 = vmul.f32 %v459, %v685
      %v734 = vmul.f32 %v464, %v687
      %v735 = vmul.f32 %v467, %v689
      %v736 = vmul.f32 %v472, %v691
      %v737 = vmul.f32 %v475, %v693
      %v738 = vmul.f32 %v480, %v695
      %v739 = vmul.f32 %v483, %v697
      %v740 = vmul.f32 %v488, %v699
      %v741 = vmul.f32 %v491, %v701
      %v742 = vmul.f32 %v496, %v703
      %v743 = vmul.f32 %v499, %v705
      %v744 = vmul.f32 %v504, %v707
      %v745 = vmul.f32 %v507, %v709
      %v746 = vmul.f32 %v512, %v711
      %v747 = vmul.f32 %v515, %v713
      %v748 = vmul.f32 %v520, %v715
      %v749 = vmul.f32 %v523, %v717
      %v750 = vpack.c.bf16 %v719, %v718
      %v751 = vpack.c.bf16 %v721, %v720
      %v752 = vpack.c.bf16 %v723, %v722
      %v753 = vpack.c.bf16 %v725, %v724
      %v754 = vpack.c.bf16 %v727, %v726
      %v755 = vpack.c.bf16 %v729, %v728
      %v756 = vpack.c.bf16 %v731, %v730
      %v757 = vpack.c.bf16 %v733, %v732
      %v758 = vpack.c.bf16 %v735, %v734
      %v759 = vpack.c.bf16 %v737, %v736
      %v760 = vpack.c.bf16 %v739, %v738
      %v761 = vpack.c.bf16 %v741, %v740
      %v762 = vpack.c.bf16 %v743, %v742
      %v763 = vpack.c.bf16 %v745, %v744
      %v764 = vpack.c.bf16 %v747, %v746
      %v765 = vpack.c.bf16 %v749, %v748
      %v782 = vunpack.c.l.b16 %v750
      %v783 = vunpack.c.h.b16 %v750
      %v784 = vunpack.c.l.b16 %v751
      %v785 = vunpack.c.h.b16 %v751
      %v786 = vunpack.c.l.b16 %v752
      %v787 = vunpack.c.h.b16 %v752
      %v788 = vunpack.c.l.b16 %v753
      %v789 = vunpack.c.h.b16 %v753
      %v790 = vunpack.c.l.b16 %v754
      %v791 = vunpack.c.h.b16 %v754
      %v792 = vunpack.c.l.b16 %v755
      %v793 = vunpack.c.h.b16 %v755
      %v794 = vunpack.c.l.b16 %v756
      %v795 = vunpack.c.h.b16 %v756
      %v796 = vunpack.c.l.b16 %v757
      %v797 = vunpack.c.h.b16 %v757
      %v798 = vunpack.c.l.b16 %v758
      %v799 = vunpack.c.h.b16 %v758
      %v800 = vunpack.c.l.b16 %v759
      %v801 = vunpack.c.h.b16 %v759
      %v802 = vunpack.c.l.b16 %v760
      %v803 = vunpack.c.h.b16 %v760
      %v804 = vunpack.c.l.b16 %v761
      %v805 = vunpack.c.h.b16 %v761
      %v806 = vunpack.c.l.b16 %v762
      %v807 = vunpack.c.h.b16 %v762
      %v808 = vunpack.c.l.b16 %v763
      %v809 = vunpack.c.h.b16 %v763
      %v810 = vunpack.c.l.b16 %v764
      %v811 = vunpack.c.h.b16 %v764
      %v812 = vunpack.c.l.b16 %v765
      %v813 = vunpack.c.h.b16 %v765
      %v814 = vpack.c.b16 %v782, %v782
      %v815 = vpack.c.b16 %v783, %v783
      %v816 = vpack.c.b16 %v784, %v784
      %v817 = vpack.c.b16 %v785, %v785
      %v818 = vpack.c.b16 %v786, %v786
      %v819 = vpack.c.b16 %v787, %v787
      %v820 = vpack.c.b16 %v788, %v788
      %v821 = vpack.c.b16 %v789, %v789
      %v822 = vpack.c.b16 %v790, %v790
      %v823 = vpack.c.b16 %v791, %v791
      %v824 = vpack.c.b16 %v792, %v792
      %v825 = vpack.c.b16 %v793, %v793
      %v826 = vpack.c.b16 %v794, %v794
      %v827 = vpack.c.b16 %v795, %v795
      %v828 = vpack.c.b16 %v796, %v796
      %v829 = vpack.c.b16 %v797, %v797
      %v830 = vpack.c.b16 %v798, %v798
      %v831 = vpack.c.b16 %v799, %v799
      %v832 = vpack.c.b16 %v800, %v800
      %v833 = vpack.c.b16 %v801, %v801
      %v834 = vpack.c.b16 %v802, %v802
      %v835 = vpack.c.b16 %v803, %v803
      %v836 = vpack.c.b16 %v804, %v804
      %v837 = vpack.c.b16 %v805, %v805
      %v838 = vpack.c.b16 %v806, %v806
      %v839 = vpack.c.b16 %v807, %v807
      %v840 = vpack.c.b16 %v808, %v808
      %v841 = vpack.c.b16 %v809, %v809
      %v842 = vpack.c.b16 %v810, %v810
      %v843 = vpack.c.b16 %v811, %v811
      %v844 = vpack.c.b16 %v812, %v812
      %v845 = vpack.c.b16 %v813, %v813
      %vm878 = vcmask 125952
      %879 = vst.msk [vmem:[%s172] sm:$0xf] %vm878, %v814
      %880 = vst.msk [vmem:[%s172 + $0x4] sm:$0xf] %vm878, %v815
      %881 = vst.msk [vmem:[%s172 + $0x8] sm:$0xf] %vm878, %v816
      %882 = vst.msk [vmem:[%s172 + $0xc] sm:$0xf] %vm878, %v817
      %883 = vst.msk [vmem:[%s172 + $0x10] sm:$0xf] %vm878, %v818
      %884 = vst.msk [vmem:[%s172 + $0x14] sm:$0xf] %vm878, %v819
      %885 = vst.msk [vmem:[%s172 + $0x18] sm:$0xf] %vm878, %v820
      %886 = vst.msk [vmem:[%s172 + $0x1c] sm:$0xf] %vm878, %v821
      %887 = vst.msk [vmem:[%s172 + $0x20] sm:$0xf] %vm878, %v822
      %888 = vst.msk [vmem:[%s172 + $0x24] sm:$0xf] %vm878, %v823
      %889 = vst.msk [vmem:[%s172 + $0x28] sm:$0xf] %vm878, %v824
      %890 = vst.msk [vmem:[%s172 + $0x2c] sm:$0xf] %vm878, %v825
      %891 = vst.msk [vmem:[%s172 + $0x30] sm:$0xf] %vm878, %v826
      %892 = vst.msk [vmem:[%s172 + $0x34] sm:$0xf] %vm878, %v827
      %893 = vst.msk [vmem:[%s172 + $0x38] sm:$0xf] %vm878, %v828
      %894 = vst.msk [vmem:[%s172 + $0x3c] sm:$0xf] %vm878, %v829
      %895 = vst.msk [vmem:[%s172 + $0x40] sm:$0xf] %vm878, %v830
      %896 = vst.msk [vmem:[%s172 + $0x44] sm:$0xf] %vm878, %v831
      %897 = vst.msk [vmem:[%s172 + $0x48] sm:$0xf] %vm878, %v832
      %898 = vst.msk [vmem:[%s172 + $0x4c] sm:$0xf] %vm878, %v833
      %899 = vst.msk [vmem:[%s172 + $0x50] sm:$0xf] %vm878, %v834
      %900 = vst.msk [vmem:[%s172 + $0x54] sm:$0xf] %vm878, %v835
      %901 = vst.msk [vmem:[%s172 + $0x58] sm:$0xf] %vm878, %v836
      %902 = vst.msk [vmem:[%s172 + $0x5c] sm:$0xf] %vm878, %v837
      %903 = vst.msk [vmem:[%s172 + $0x60] sm:$0xf] %vm878, %v838
      %904 = vst.msk [vmem:[%s172 + $0x64] sm:$0xf] %vm878, %v839
      %905 = vst.msk [vmem:[%s172 + $0x68] sm:$0xf] %vm878, %v840
      %906 = vst.msk [vmem:[%s172 + $0x6c] sm:$0xf] %vm878, %v841
      %907 = vst.msk [vmem:[%s172 + $0x70] sm:$0xf] %vm878, %v842
      %908 = vst.msk [vmem:[%s172 + $0x74] sm:$0xf] %vm878, %v843
      %909 = vst.msk [vmem:[%s172 + $0x78] sm:$0xf] %vm878, %v844
      %910 = vst.msk [vmem:[%s172 + $0x7c] sm:$0xf] %vm878, %v845
      %s911 = smul.u32 32, %s14
      %p912 = scmp.lt.s32.totalorder %s911, 63
      %s913 = scalar_select %p912, %s911, 63
      %s914 = smul.addr %s913, 4
      %s915 = scalar_lea.vmem %s3, %s914
      // Predicated region
      $region33: #{tpu_custom_call.1} parent=31 // pred_check
        %p916 = pneg %p100
      $region34: #{tpu_custom_call.1} parent=31 // pred_check_branch
        %918 = sbr.rel (%p916) target = $region36
      $region35: #{tpu_custom_call.1} parent=31 // pred_region
        %s919 = smul.u32 32, %s14
      $region36: #{tpu_custom_call.1} parent=31 // pred_fallthru
        _
    $region32: #{tpu_custom_call.1} parent=5 // pred_fallthru
      _
    %p920 = scmp.le.s32.totalorder 2, %s9
    // Predicated region
    $region37: #{tpu_custom_call.1} parent=5 // pred_check
      %p921 = pneg %p920
    $region38: #{tpu_custom_call.1} parent=5 // pred_check_branch
      %923 = sbr.rel (%p921) target = $region40
    $region39: #{tpu_custom_call.1} parent=5 // pred_region
      %s924 = ssub.s32 %s9, 2
      // Predicated region
      $region41: #{tpu_custom_call.1} parent=39 // pred_check
        %p925 = pneg %p106
      $region42: #{tpu_custom_call.1} parent=39 // pred_check_branch
        %927 = sbr.rel (%p925) target = $region44
      $region43: #{tpu_custom_call.1} parent=39 // pred_region
        %s928 = smul.u32 32, %s15
        %p929 = scmp.lt.s32.totalorder %s928, 63
        %s930 = scalar_select %p929, %s928, 63
        %s931 = smul.addr %s930, 4
        %s932 = scalar_lea.vmem %s3, %s931
      $region44: #{tpu_custom_call.1} parent=39 // pred_fallthru
        _
    $region40: #{tpu_custom_call.1} parent=5 // pred_fallthru
      _
  $region6: #{tpu_custom_call.1} parent=0 // loop_footer
    %s13 = sadd.s32 1, %s9
  $region7: #{tpu_custom_call.1} parent=0 // loop_footer_branch
    %8 = sbr.rel target = $region3
  $region8: #{tpu_custom_call.1} parent=0 // loop_exit
    _

</llo_original>
